<compile_context>
chip_gen: v5e
topology: v5e:2x2
jax: 0.10.0
libtpu: 0.0.40
codegen_flags: <defaults>
</compile_context>

<pallas_src>
import functools

import jax
import jax.numpy as jnp
from jax.experimental import pallas as pl
from jax.experimental.pallas import tpu as pltpu


def _cdiv(a, b):
    return -(-a // b)


def _round_up(a, b):
    return _cdiv(a, b) * b


def _dropout_scale_mask(seed, shape, dtype, dropout_rate):
    """Inverted-dropout scale mask: keep/(1-p) where kept, 0 where dropped."""
    rate = min(max(float(dropout_rate), 0.0), 1.0)
    if rate >= 1.0:                       # degenerate: drop everything
        return jnp.zeros(shape, dtype)
    keep_prob = 1.0 - rate
    keep = jax.random.bernoulli(jax.random.PRNGKey(seed), p=keep_prob, shape=shape)
    return keep.astype(dtype) * jnp.asarray(1.0 / keep_prob, dtype=dtype)


# ---------------------------------------------------------------------------
# Kernels
# ---------------------------------------------------------------------------
def _fc_rowpanel_kernel(*refs, use_activation, apply_dropout):
    """Main path, grid = (i, j).

    x (+ mask) blocks are j-invariant row panels (tm, K_pad): fetched once per
    i.  dropout->tanh is computed once per row panel (j == 0), fed directly to
    the MXU and side-stored into a bf16 VMEM cache reused by all j > 0 passes.
    """
    if apply_dropout:
        x_ref, mask_ref, w_ref, b_ref, o_ref, xact_ref = refs
    else:
        x_ref, w_ref, b_ref, o_ref, xact_ref = refs
        mask_ref = None
    j = pl.program_id(1)

    def matmul_store(xa):
        acc = jnp.dot(xa, w_ref[...], preferred_element_type=jnp.float32)
        o_ref[...] = (acc + b_ref[...].astype(jnp.float32)).astype(o_ref.dtype)

    @pl.when(j == 0)
    def _():
        x = x_ref[...]                          # native dtype (f32)
        if apply_dropout:
            x = x * mask_ref[...]               # inverted-dropout scale mask
        if use_activation:
            x = jnp.tanh(x)
        xa = x.astype(xact_ref.dtype)           # MXU operand dtype (bf16)
        xact_ref[...] = xa                      # side store (no vst->vld trip)
        matmul_store(xa)

    @pl.when(j > 0)
    def _():
        matmul_store(xact_ref[...])


def _fc_kgrid_kernel(*refs, use_activation, apply_dropout):
    """Fallback path, grid = (i, j, k), for very large K (row panel would not
    fit the per-core VMEM budget, e.g. v7x 64 MiB/TC).  Activation is
    recomputed per (i, j, k) tile; K reduction uses an f32 VMEM accumulator.
    """
    if apply_dropout:
        x_ref, mask_ref, w_ref, b_ref, o_ref, acc_ref = refs
    else:
        x_ref, w_ref, b_ref, o_ref, acc_ref = refs
        mask_ref = None
    k = pl.program_id(2)

    @pl.when(k == 0)
    def _():
        acc_ref[...] = jnp.zeros_like(acc_ref)

    x = x_ref[...]
    if apply_dropout:
        x = x * mask_ref[...]
    if use_activation:
        x = jnp.tanh(x)
    acc_ref[...] += jnp.dot(x.astype(w_ref.dtype), w_ref[...],
                            preferred_element_type=jnp.float32)

    @pl.when(k == pl.num_programs(2) - 1)
    def _():
        o_ref[...] = (acc_ref[...] + b_ref[...].astype(jnp.float32)).astype(o_ref.dtype)


# ---------------------------------------------------------------------------
# Wrapper
# ---------------------------------------------------------------------------
def fc_layer(x, weight, bias, *, dropout_rate=0.1, use_activation=True,
             training=False, seed=0,
             tm=512, tn=512, tk=512,            # v5e prefers tk=1024 on fallback
             mxu_dtype=jnp.bfloat16,            # None -> keep native dtype
             use_row_panel_cache=None,          # None -> auto by VMEM budget
             vmem_budget_bytes=48 * 1024 * 1024):
    """FCLayer forward.

    x:      (M, K)  activations
    weight: (N, K)  torch nn.Linear layout (output_dim, input_dim)
    bias:   (N,)
    returns (M, N) in x.dtype.
    """
    M, K = x.shape
    N, Kw = weight.shape
    assert K == Kw and bias.shape == (N,)
    assert tm % 8 == 0 and tn % 128 == 0 and tk % 128 == 0

    out_dtype = x.dtype
    mxu_dt = jnp.dtype(mxu_dtype) if mxu_dtype is not None else jnp.dtype(x.dtype)

    apply_dropout = bool(training) and float(dropout_rate) > 0.0
    mask = (_dropout_scale_mask(seed, (M, K), x.dtype, dropout_rate)
            if apply_dropout else None)

    # NOTE: in a real model W^T / bias would be transposed, cast and padded
    # once at load time instead of on every call.
    weight_t = weight.T.astype(mxu_dt)                     # (K, N), bf16
    bias2d = bias.astype(jnp.float32).reshape(1, N)

    # ---- tile selection ----------------------------------------------------
    tm = min(tm, _round_up(M, 8))
    tn = min(tn, _round_up(N, 128))
    tk = min(tk, _round_up(K, 128))
    # v7x megacore: keep >= 2 blocks on the "parallel" i axis (shrink tm, not tn).
    if M > 8 and _cdiv(M, tm) < 2:
        tm = _round_up(_cdiv(M, 2), 8)

    x_isz = jnp.dtype(x.dtype).itemsize
    w_isz = mxu_dt.itemsize
    o_isz = jnp.dtype(out_dtype).itemsize
    n_xstreams = 2 if apply_dropout else 1
    K_full = _round_up(K, 128)

    def rowpanel_vmem(tm_):
        return (2 * n_xstreams * tm_ * K_full * x_isz      # x (+mask), dbl-buffered
                + 2 * K_full * tn * w_isz                  # W^T, dbl-buffered
                + 2 * tn * 4                               # bias
                + 2 * tm_ * tn * o_isz                     # out, dbl-buffered
                + tm_ * K_full * w_isz)                    # activation cache

    def kgrid_vmem(tm_):
        return (2 * n_xstreams * tm_ * tk * x_isz
                + 2 * tk * tn * w_isz
                + 2 * tn * 4
                + 2 * tm_ * tn * o_isz
                + tm_ * tn * 4)                            # f32 accumulator

    if use_row_panel_cache is None or use_row_panel_cache:
        tm_c = tm
        while rowpanel_vmem(tm_c) > vmem_budget_bytes and tm_c > 64:
            tm_c = _round_up(max(tm_c // 2, 8), 8)
        fits = rowpanel_vmem(tm_c) <= vmem_budget_bytes
        if use_row_panel_cache is None:
            use_row_panel_cache = fits
        if use_row_panel_cache:
            tm = tm_c
    if not use_row_panel_cache:
        while kgrid_vmem(tm) > vmem_budget_bytes and tm > 64:
            tm = _round_up(max(tm // 2, 8), 8)

    # ---- pad to whole tiles (exact: padded x cols are 0, padded W rows are 0)
    K_pad = K_full if use_row_panel_cache else _round_up(K, tk)
    M_pad = _round_up(M, tm)
    N_pad = _round_up(N, tn)

    x_p = jnp.pad(x, ((0, M_pad - M), (0, K_pad - K))) if (M_pad, K_pad) != (M, K) else x
    w_p = (jnp.pad(weight_t, ((0, K_pad - K), (0, N_pad - N)))
           if (K_pad, N_pad) != (K, N) else weight_t)
    b_p = jnp.pad(bias2d, ((0, 0), (0, N_pad - N))) if N_pad != N else bias2d
    if apply_dropout:
        m_p = (jnp.pad(mask, ((0, M_pad - M), (0, K_pad - K)))
               if (M_pad, K_pad) != (M, K) else mask)

    out_shape = jax.ShapeDtypeStruct((M_pad, N_pad), out_dtype)

    if use_row_panel_cache:
        grid = (M_pad // tm, N_pad // tn)
        in_specs = [pl.BlockSpec((tm, K_pad), lambda i, j: (i, 0))]        # x
        operands = [x_p]
        if apply_dropout:
            in_specs.append(pl.BlockSpec((tm, K_pad), lambda i, j: (i, 0)))  # mask
            operands.append(m_p)
        in_specs += [pl.BlockSpec((K_pad, tn), lambda i, j: (0, j)),       # W^T
                     pl.BlockSpec((1, tn), lambda i, j: (0, j))]           # bias
        operands += [w_p, b_p]
        out_spec = pl.BlockSpec((tm, tn), lambda i, j: (i, j))
        scratch = [pltpu.VMEM((tm, K_pad), mxu_dt)]                        # bf16 cache
        kernel = functools.partial(_fc_rowpanel_kernel,
                                   use_activation=bool(use_activation),
                                   apply_dropout=apply_dropout)
        # j must stay "arbitrary": the activation cache for row panel i is
        # filled on that core's j == 0 pass.
        dims = ("parallel", "arbitrary")
        est = rowpanel_vmem(tm)
    else:
        grid = (M_pad // tm, N_pad // tn, K_pad // tk)
        in_specs = [pl.BlockSpec((tm, tk), lambda i, j, k: (i, k))]        # x
        operands = [x_p]
        if apply_dropout:
            in_specs.append(pl.BlockSpec((tm, tk), lambda i, j, k: (i, k)))  # mask
            operands.append(m_p)
        in_specs += [pl.BlockSpec((tk, tn), lambda i, j, k: (k, j)),       # W^T
                     pl.BlockSpec((1, tn), lambda i, j, k: (0, j))]        # bias
        operands += [w_p, b_p]
        out_spec = pl.BlockSpec((tm, tn), lambda i, j, k: (i, j))
        scratch = [pltpu.VMEM((tm, tn), jnp.float32)]                      # f32 acc
        kernel = functools.partial(_fc_kgrid_kernel,
                                   use_activation=bool(use_activation),
                                   apply_dropout=apply_dropout)
        dims = ("parallel", "arbitrary", "arbitrary")
        est = kgrid_vmem(tm)

    # vmem limit from the actual buffer sum + ~30% headroom, capped for v7x.
    vmem_limit = int(max(32 * 1024 * 1024, min(64 * 1024 * 1024, est * 13 // 10)))

    out = pl.pallas_call(
        kernel,
        out_shape=out_shape,
        grid=grid,
        in_specs=in_specs,
        out_specs=out_spec,
        scratch_shapes=scratch,
        compiler_params=pltpu.CompilerParams(
            dimension_semantics=dims,
            vmem_limit_bytes=vmem_limit,
        ),
    )(*operands)

    return out[:M, :N]


# ---------------------------------------------------------------------------
# Demo / correctness check
# ---------------------------------------------------------------------------
if __name__ == "__main__":
    batch, input_dim, output_dim = 200, 320, 192   # exercises M/N/K padding

    key = jax.random.PRNGKey(0)
    kx, kw, kb = jax.random.split(key, 3)

    x = jax.random.normal(kx, (batch, input_dim), dtype=jnp.float32)
    bound = 1.0 / (input_dim ** 0.5)                # torch nn.Linear default init
    weight = jax.random.uniform(kw, (output_dim, input_dim),
                                minval=-bound, maxval=bound, dtype=jnp.float32)
    bias = jax.random.uniform(kb, (output_dim,),
                              minval=-bound, maxval=bound, dtype=jnp.float32)

    # Reference with the same numerics as the kernel (bf16 operands, f32 acc).
    w_bf16_t = weight.astype(jnp.bfloat16).T

    def ref_fwd(x_act):
        xa = x_act.astype(jnp.bfloat16)
        return jnp.dot(xa, w_bf16_t, preferred_element_type=jnp.float32) + bias[None, :]

    # 1) eval mode (dropout = identity), main row-panel path; small tiles so a
    #    real (2, 2) grid with activation-cache reuse across j is exercised.
    out = fc_layer(x, weight, bias, dropout_rate=0.1, use_activation=True,
                   training=False, tm=128, tn=128, tk=128)
    out = jax.block_until_ready(out)
    assert out.shape == (batch, output_dim)
    assert jnp.allclose(out, ref_fwd(jnp.tanh(x)), atol=5e-3, rtol=5e-3)

    # 2) eval mode, k-grid fallback path (large-K / tight-VMEM fallback).
    out_kg = fc_layer(x, weight, bias, dropout_rate=0.1, use_activation=True,
                      training=False, tm=128, tn=128, tk=128,
                      use_row_panel_cache=False)
    out_kg = jax.block_until_ready(out_kg)
    assert jnp.allclose(out_kg, ref_fwd(jnp.tanh(x)), atol=5e-3, rtol=5e-3)

    # 3) training mode: inverted dropout with a jax.random mask (deterministic
    #    per seed, independent of tiling).
    seed, rate = 123, 0.25
    out_tr = fc_layer(x, weight, bias, dropout_rate=rate, use_activation=True,
                      training=True, seed=seed, tm=128, tn=128, tk=128)
    out_tr = jax.block_until_ready(out_tr)
    mask = _dropout_scale_mask(seed, (batch, input_dim), jnp.float32, rate)
    assert out_tr.shape == (batch, output_dim)
    assert jnp.allclose(out_tr, ref_fwd(jnp.tanh(x * mask)), atol=5e-3, rtol=5e-3)

    print("KERNEL_OK")
</pallas_src>

<mosaic_0001>
module attributes {stable_mosaic.version = 11 : i64} {
  func.func @_fc_rowpanel_kernel(%arg0: i32, %arg1: i32, %arg2: memref<128x384xf32, #tpu.memory_space<vmem>>, %arg3: memref<384x128xbf16, #tpu.memory_space<vmem>>, %arg4: memref<1x128xf32, #tpu.memory_space<vmem>>, %arg5: memref<128x128xf32, #tpu.memory_space<vmem>>, %arg6: memref<128x384xbf16, #tpu.memory_space<vmem>>) attributes {dimension_semantics = [#tpu.dimension_semantics<parallel>, #tpu.dimension_semantics<arbitrary>], iteration_bounds = array<i64: 2, 2>, scalar_prefetch = 0 : i64, scratch_operands = 1 : i64, tpu.core_type = #tpu.core_type<tc>, window_params = [{transform_indices = @transform_0, window_bounds = array<i64: 128, 384>}, {transform_indices = @transform_1, window_bounds = array<i64: 384, 128>}, {transform_indices = @transform_2, window_bounds = array<i64: 1, 128>}, {transform_indices = @transform_3, window_bounds = array<i64: 128, 128>}]} {
    %c0_i32 = arith.constant 0 : i32
    %0 = arith.cmpi eq, %arg1, %c0_i32 : i32
    %1 = arith.extui %0 : i1 to i32
    %c0_i32_0 = arith.constant 0 : i32
    %2 = arith.cmpi ne, %1, %c0_i32_0 : i32
    scf.if %2 {
      %c0 = arith.constant 0 : index
      %c0_3 = arith.constant 0 : index
      %6 = vector.load %arg2[%c0, %c0_3] : memref<128x384xf32, #tpu.memory_space<vmem>>, vector<128x384xf32>
      %7 = math.tanh %6 : vector<128x384xf32>
      %8 = arith.truncf %7 : vector<128x384xf32> to vector<128x384xbf16>
      %c0_4 = arith.constant 0 : index
      %c0_5 = arith.constant 0 : index
      %9 = vector.load %arg6[%c0_4, %c0_5] : memref<128x384xbf16, #tpu.memory_space<vmem>>, vector<128x384xbf16>
      tpu.vector_store %arg6[%c0_4, %c0_5], %8 {strides = array<i32>} : memref<128x384xbf16, #tpu.memory_space<vmem>>, vector<128x384xbf16>,
      %c0_6 = arith.constant 0 : index
      %c0_7 = arith.constant 0 : index
      %10 = vector.load %arg3[%c0_6, %c0_7] : memref<384x128xbf16, #tpu.memory_space<vmem>>, vector<384x128xbf16>
      %cst = arith.constant dense<0.000000e+00> : vector<128x128xf32>
      %11 = tpu.matmul %8, %10, %cst {dimension_numbers = #tpu.dot_dimension_numbers<[1], [0], [0], [1], [0, 0, 1, 1], [], []>} : vector<128x384xbf16>, vector<384x128xbf16>, vector<128x128xf32> -> vector<128x128xf32>
      %c0_8 = arith.constant 0 : index
      %c0_9 = arith.constant 0 : index
      %12 = vector.load %arg4[%c0_8, %c0_9] : memref<1x128xf32, #tpu.memory_space<vmem>>, vector<1x128xf32>
      %13 = vector.broadcast %12 : vector<1x128xf32> to vector<128x128xf32>
      %14 = arith.addf %11, %13 : vector<128x128xf32>
      %c0_10 = arith.constant 0 : index
      %c0_11 = arith.constant 0 : index
      %15 = vector.load %arg5[%c0_10, %c0_11] : memref<128x128xf32, #tpu.memory_space<vmem>>, vector<128x128xf32>
      tpu.vector_store %arg5[%c0_10, %c0_11], %14 {strides = array<i32>} : memref<128x128xf32, #tpu.memory_space<vmem>>, vector<128x128xf32>,
    } else {
    }
    %c0_i32_1 = arith.constant 0 : i32
    %3 = arith.cmpi sgt, %arg1, %c0_i32_1 : i32
    %4 = arith.extui %3 : i1 to i32
    %c0_i32_2 = arith.constant 0 : i32
    %5 = arith.cmpi ne, %4, %c0_i32_2 : i32
    scf.if %5 {
      %c0 = arith.constant 0 : index
      %c0_3 = arith.constant 0 : index
      %6 = vector.load %arg6[%c0, %c0_3] : memref<128x384xbf16, #tpu.memory_space<vmem>>, vector<128x384xbf16>
      %c0_4 = arith.constant 0 : index
      %c0_5 = arith.constant 0 : index
      %7 = vector.load %arg3[%c0_4, %c0_5] : memref<384x128xbf16, #tpu.memory_space<vmem>>, vector<384x128xbf16>
      %cst = arith.constant dense<0.000000e+00> : vector<128x128xf32>
      %8 = tpu.matmul %6, %7, %cst {dimension_numbers = #tpu.dot_dimension_numbers<[1], [0], [0], [1], [0, 0, 1, 1], [], []>} : vector<128x384xbf16>, vector<384x128xbf16>, vector<128x128xf32> -> vector<128x128xf32>
      %c0_6 = arith.constant 0 : index
      %c0_7 = arith.constant 0 : index
      %9 = vector.load %arg4[%c0_6, %c0_7] : memref<1x128xf32, #tpu.memory_space<vmem>>, vector<1x128xf32>
      %10 = vector.broadcast %9 : vector<1x128xf32> to vector<128x128xf32>
      %11 = arith.addf %8, %10 : vector<128x128xf32>
      %c0_8 = arith.constant 0 : index
      %c0_9 = arith.constant 0 : index
      %12 = vector.load %arg5[%c0_8, %c0_9] : memref<128x128xf32, #tpu.memory_space<vmem>>, vector<128x128xf32>
      tpu.vector_store %arg5[%c0_8, %c0_9], %11 {strides = array<i32>} : memref<128x128xf32, #tpu.memory_space<vmem>>, vector<128x128xf32>,
    } else {
    }
    return
  }
  func.func @transform_0(%arg0: i32, %arg1: i32) -> (i32, i32) {
    %c0_i32 = arith.constant 0 : i32
    %c0_i32_0 = arith.constant 0 : i32
    return %arg0, %c0_i32 : i32, i32
  }
  func.func @transform_1(%arg0: i32, %arg1: i32) -> (i32, i32) {
    %c0_i32 = arith.constant 0 : i32
    %c0_i32_0 = arith.constant 0 : i32
    return %c0_i32, %arg1 : i32, i32
  }
  func.func @transform_2(%arg0: i32, %arg1: i32) -> (i32, i32) {
    %c0_i32 = arith.constant 0 : i32
    %c0_i32_0 = arith.constant 0 : i32
    return %c0_i32, %arg1 : i32, i32
  }
  func.func @transform_3(%arg0: i32, %arg1: i32) -> (i32, i32) {
    %c0_i32 = arith.constant 0 : i32
    return %arg0, %arg1 : i32, i32
  }
}

</mosaic_0001>

<llo_original>
// kernel: tpu_custom_call.1
$region0: #{tpu_custom_call.1}
  #allocation0 [shape = 'u32[]', space=smem, size = 0x4, offset = 0x4, fixed_abs, tag = 'smem constant byte address 0x4 - core index']
  #allocation1 [shape = 'u32[72,128]{1,0:T(1,128)}', space=vmem, size = 0x9000, scoped, tag = 'internal scratch']
  #allocation2 [shape = 'bf16[128,384]{1,0:T(8,128)(2,1)}', space=vmem, size = 0x18000, scoped, tag = 'scratch operand']
  %s0 = inlined_call_operand.hbm [shape: f32[256,384], index: 0, kind: input, shape index: {}]
  %s1 = inlined_call_operand.hbm [shape: bf16[384,256], index: 1, kind: input, shape index: {}]
  %s2 = inlined_call_operand.hbm [shape: f32[1,256], index: 2, kind: input, shape index: {}]
  %s3 = inlined_call_operand.hbm [shape: f32[256,256], index: 3, kind: output, shape index: {}]
  %s4 = sld [smem:[#allocation0]]
  $region65: #{tpu_custom_call.1} parent=0
    _
  %s6 = ssub.s32 1, %s4
  %s7 = scalar_select 0, %s6, %s4
  $region1: #{tpu_custom_call.1} parent=0
    #allocation3 [shape = 'u8[393216]{0}', space=vmem, size = 0x60000, scoped, tag = 'input window, operand 0']
    #allocation4 [shape = 's32[2]{0}', space=sflag, size = 0x8, scoped, tag = 'scoped memory for tpu_custom_call.1']
    #allocation5 [shape = 's32[2]{0}', space=sflag, size = 0x8, scoped, tag = 'scoped memory for tpu_custom_call.1']
    #allocation6 [shape = 'u8[196608]{0}', space=vmem, size = 0x30000, scoped, tag = 'input window, operand 1']
    #allocation7 [shape = 's32[2]{0}', space=sflag, size = 0x8, scoped, tag = 'scoped memory for tpu_custom_call.1']
    #allocation8 [shape = 'u8[1024]{0}', space=vmem, size = 0x400, scoped, tag = 'input window, operand 2']
    #allocation9 [shape = 'u8[131072]{0}', space=vmem, size = 0x20000, scoped, tag = 'output window, operand 0']
    %8 = vsyncpa [#allocation4], 0
    %s9 = scalar_lea.sflag [#allocation4], 1
    %10 = vsyncpa %s9, 0
    %11 = vsyncpa [#allocation7], 0
    %s12 = scalar_lea.sflag [#allocation7], 1
    %13 = vsyncpa %s12, 0
    %14 = vsyncpa [#allocation5], 0
    %s15 = scalar_lea.sflag [#allocation5], 1
    %16 = vsyncpa %s15, 0
    loop: start=0, step=1, limit=6
    $region2: #{tpu_custom_call.1} parent=1 // loop_pre_header
      _
    $region3: #{tpu_custom_call.1} parent=1 // loop_header
      %s18 = sphi 0, %s22
      %p19 = scmp.ge.s32.totalorder %s18, 6
      %s25 = sphi 0, %s37
      %s26 = sphi 0, %s33
      %s27 = sphi 0, %s25
      %s28 = sphi 0, %s26
      %s29 = sphi 0, %s27
      %s30 = sphi 0, %s28
      %s40 = sphi 0, %s42
      %s43 = sphi 0, %s40
      %s44 = sphi 0, %s43
      %s60 = sphi 0, %s44
      %s66 = sphi 0, %s68
      %s69 = sphi 0, %s66
      %s70 = sphi 0, %s69
      %s86 = sphi 0, %s70
      %s92 = sphi 0, %s94
      %s95 = sphi 0, %s92
      %s96 = sphi 0, %s95
      %s112 = sphi 0, %s96
      %s120 = sphi 0, %s122
      %s123 = sphi 0, %s120
      %s124 = sphi 0, %s123
      %s140 = sphi 0, %s124
    $region4: #{tpu_custom_call.1} parent=1 // loop_header_branch
      %21 = sbr.rel (%p19) target = $region8
    $region5: #{tpu_custom_call.1} parent=1 // loop_body
      %s23 = ssub.s32 %s18, 1
      %s24 = ssub.s32 %s18, 2
      %s31 = sadd.s32 1, %s26
      %p32 = scmp.ge.s32.totalorder %s31, 2
      %s33 = scalar_select %p32, 0, %s31
      %s34 = sadd.s32 1, %s25
      %s35 = scalar_select %p32, %s34, %s25
      %p36 = scmp.ge.s32.totalorder %s35, 2
      %s37 = scalar_select %p36, 0, %s35
      %s38 = ssub.s32 %s25, %s37
      %p39 = scmp.eq.s32.totalorder %s38, 0
      %s41 = sadd.s32 %s40, 1
      %s42 = scalar_select %p39, %s40, %s41
      %p45 = pneg %p39
      %p46 = scmp.eq.s32.totalorder %s18, 3
      %p47 = por %p45, %p46
      %p48 = scmp.ne.s32.totalorder %s40, %s43
      %p49 = scmp.eq.s32.totalorder %s18, 0
      %p50 = por %p48, %p49
      %p51 = scmp.ne.s32.totalorder %s40, %s43
      %p52 = scmp.eq.s32.totalorder %s23, 3
      %p53 = por %p51, %p52
      %p54 = scmp.ne.s32.totalorder %s43, %s44
      %p55 = scmp.eq.s32.totalorder %s23, 0
      %p56 = por %p54, %p55
      %p57 = scmp.ne.s32.totalorder %s43, %s44
      %p58 = scmp.eq.s32.totalorder %s24, 3
      %p59 = por %p57, %p58
      %p61 = scmp.ne.s32.totalorder %s44, %s60
      %p62 = scmp.eq.s32.totalorder %s24, 0
      %p63 = por %p61, %p62
      %s64 = ssub.s32 %s26, %s33
      %p65 = scmp.eq.s32.totalorder %s64, 0
      %s67 = sadd.s32 %s66, 1
      %s68 = scalar_select %p65, %s66, %s67
      %p71 = pneg %p65
      %p72 = scmp.eq.s32.totalorder %s18, 3
      %p73 = por %p71, %p72
      %p74 = scmp.ne.s32.totalorder %s66, %s69
      %p75 = scmp.eq.s32.totalorder %s18, 0
      %p76 = por %p74, %p75
      %p77 = scmp.ne.s32.totalorder %s66, %s69
      %p78 = scmp.eq.s32.totalorder %s23, 3
      %p79 = por %p77, %p78
      %p80 = scmp.ne.s32.totalorder %s69, %s70
      %p81 = scmp.eq.s32.totalorder %s23, 0
      %p82 = por %p80, %p81
      %p83 = scmp.ne.s32.totalorder %s69, %s70
      %p84 = scmp.eq.s32.totalorder %s24, 3
      %p85 = por %p83, %p84
      %p87 = scmp.ne.s32.totalorder %s70, %s86
      %p88 = scmp.eq.s32.totalorder %s24, 0
      %p89 = por %p87, %p88
      %s90 = ssub.s32 %s26, %s33
      %p91 = scmp.eq.s32.totalorder %s90, 0
      %s93 = sadd.s32 %s92, 1
      %s94 = scalar_select %p91, %s92, %s93
      %p97 = pneg %p91
      %p98 = scmp.eq.s32.totalorder %s18, 3
      %p99 = por %p97, %p98
      %p100 = scmp.ne.s32.totalorder %s92, %s95
      %p101 = scmp.eq.s32.totalorder %s18, 0
      %p102 = por %p100, %p101
      %p103 = scmp.ne.s32.totalorder %s92, %s95
      %p104 = scmp.eq.s32.totalorder %s23, 3
      %p105 = por %p103, %p104
      %p106 = scmp.ne.s32.totalorder %s95, %s96
      %p107 = scmp.eq.s32.totalorder %s23, 0
      %p108 = por %p106, %p107
      %p109 = scmp.ne.s32.totalorder %s95, %s96
      %p110 = scmp.eq.s32.totalorder %s24, 3
      %p111 = por %p109, %p110
      %p113 = scmp.ne.s32.totalorder %s96, %s112
      %p114 = scmp.eq.s32.totalorder %s24, 0
      %p115 = por %p113, %p114
      %s116 = ssub.s32 %s25, %s37
      %s117 = ssub.s32 %s26, %s33
      %s118 = sor.u32 %s116, %s117
      %p119 = scmp.eq.s32.totalorder %s118, 0
      %s121 = sadd.s32 %s120, 1
      %s122 = scalar_select %p119, %s120, %s121
      %p125 = pneg %p119
      %p126 = scmp.eq.s32.totalorder %s18, 3
      %p127 = por %p125, %p126
      %p128 = scmp.ne.s32.totalorder %s120, %s123
      %p129 = scmp.eq.s32.totalorder %s18, 0
      %p130 = por %p128, %p129
      %p131 = scmp.ne.s32.totalorder %s120, %s123
      %p132 = scmp.eq.s32.totalorder %s23, 3
      %p133 = por %p131, %p132
      %p134 = scmp.ne.s32.totalorder %s123, %s124
      %p135 = scmp.eq.s32.totalorder %s23, 0
      %p136 = por %p134, %p135
      %p137 = scmp.ne.s32.totalorder %s123, %s124
      %p138 = scmp.eq.s32.totalorder %s24, 3
      %p139 = por %p137, %p138
      %p141 = scmp.ne.s32.totalorder %s124, %s140
      %p142 = scmp.eq.s32.totalorder %s24, 0
      %p143 = por %p141, %p142
      %p144 = scmp.le.s32.totalorder 1, %s18
      %p145 = scmp.lt.s32.totalorder %s18, 5
      %p146 = pnand %p144, %p145
      %p147 = pneg %p146
      // Predicated region
      $region9: #{tpu_custom_call.1} parent=5 // pred_check
        _
      $region10: #{tpu_custom_call.1} parent=5 // pred_check_branch
        %149 = sbr.rel (%p146) target = $region12
      $region11: #{tpu_custom_call.1} parent=5 // pred_region
        %s150 = ssub.s32 %s18, 1
      $region12: #{tpu_custom_call.1} parent=5 // pred_fallthru
        _
      %p151 = scmp.lt.s32.totalorder %s18, 4
      // Predicated region
      $region13: #{tpu_custom_call.1} parent=5 // pred_check
        %p152 = pneg %p151
      $region14: #{tpu_custom_call.1} parent=5 // pred_check_branch
        %154 = sbr.rel (%p152) target = $region16
      $region15: #{tpu_custom_call.1} parent=5 // pred_region
        // Predicated region
        $region17: #{tpu_custom_call.1} parent=15 // pred_check
          %p155 = pneg %p50
        $region18: #{tpu_custom_call.1} parent=15 // pred_check_branch
          %157 = sbr.rel (%p155) target = $region20
        $region19: #{tpu_custom_call.1} parent=15 // pred_region
          %s158 = sand.u32 %s40, 1
          %s159 = scalar_lea.sflag [#allocation4], %s158
          %s160 = sand.u32 %s40, 1
          %s161 = smul.addr %s160, 384
          %s162 = scalar_lea.vmem [#allocation3], %s161
          %s163 = smul.u32 16, %s25
          %165 = vsyncadd %s159, 0
          %s166 = smul.addr %s163, 3
          %s167 = smul.addr %s166, 8
          %s168 = scalar_lea.hbm %s0, %s167
          %s169 = sshll.u32 %s168, 4
          %s170 = int_to_ptr.hbm [resolvable:$true] %s169
          %s171 = sshll.u32 %s162, 4
          %s172 = int_to_ptr.vmem [resolvable:$true] %s171
          %177 = dma.hbm_to_vmem [thread:$0]  %s170, 6144, %s172, %s159, 384, 384, 24
        $region20: #{tpu_custom_call.1} parent=15 // pred_fallthru
          _
        // Predicated region
        $region21: #{tpu_custom_call.1} parent=15 // pred_check
          %p178 = pneg %p76
        $region22: #{tpu_custom_call.1} parent=15 // pred_check_branch
          %180 = sbr.rel (%p178) target = $region24
        $region23: #{tpu_custom_call.1} parent=15 // pred_region
          %s181 = sand.u32 %s18, 1
          %s182 = scalar_lea.sflag [#allocation7], %s181
          %s183 = sand.u32 %s66, 1
          %s184 = smul.addr %s183, 192
          %s185 = scalar_lea.vmem [#allocation6], %s184
          %187 = vsyncadd %s182, 0
          %s188 = smul.addr %s26, 4
          %s189 = scalar_lea.hbm %s1, %s188
          %s190 = sshll.u32 %s189, 4
          %s191 = int_to_ptr.hbm [resolvable:$true] %s190
          %s192 = sshll.u32 %s185, 4
          %s193 = int_to_ptr.vmem [resolvable:$true] %s192
          %198 = dma.hbm_to_vmem [thread:$0]  %s191, 3072, %s193, %s182, 128, 64, 4
        $region24: #{tpu_custom_call.1} parent=15 // pred_fallthru
          _
        // Predicated region
        $region25: #{tpu_custom_call.1} parent=15 // pred_check
          %p199 = pneg %p102
        $region26: #{tpu_custom_call.1} parent=15 // pred_check_branch
          %201 = sbr.rel (%p199) target = $region28
        $region27: #{tpu_custom_call.1} parent=15 // pred_region
          %s202 = sand.u32 %s18, 1
          %s203 = scalar_lea.sflag [#allocation7], %s202
          %s204 = sand.u32 %s92, 1
          %s205 = scalar_lea.vmem [#allocation8], %s204
          %207 = vsyncadd %s203, 0
          %s208 = scalar_lea.hbm %s2, %s26
          %s210 = sshll.u32 %s208, 4
          %s211 = int_to_ptr.hbm [resolvable:$true] %s210
          %s212 = sshll.u32 %s205, 4
          %s213 = int_to_ptr.vmem [resolvable:$true] %s212
          %215 = dma.hbm_to_vmem [thread:$0]  %s211, 16, %s213, %s203
        $region28: #{tpu_custom_call.1} parent=15 // pred_fallthru
          _
      $region16: #{tpu_custom_call.1} parent=5 // pred_fallthru
        _
      %p216 = scmp.le.s32.totalorder 1, %s18
      %p217 = scmp.lt.s32.totalorder %s18, 5
      %p218 = pnand %p216, %p217
      %p219 = pneg %p218
      // Predicated region
      $region29: #{tpu_custom_call.1} parent=5 // pred_check
        _
      $region30: #{tpu_custom_call.1} parent=5 // pred_check_branch
        %221 = sbr.rel (%p218) target = $region32
      $region31: #{tpu_custom_call.1} parent=5 // pred_region
        %s222 = ssub.s32 %s18, 1
        %s223 = sand.u32 %s43, 1
        %s224 = scalar_lea.sflag [#allocation4], %s223
        %s225 = sand.u32 %s43, 1
        %s226 = smul.addr %s225, 384
        %s227 = scalar_lea.vmem [#allocation3], %s226
        // Predicated region
        $region33: #{tpu_custom_call.1} parent=31 // pred_check
          %p228 = pneg %p56
        $region34: #{tpu_custom_call.1} parent=31 // pred_check_branch
          %230 = sbr.rel (%p228) target = $region36
        $region35: #{tpu_custom_call.1} parent=31 // pred_region
          %232 = dma.done %s224, 6144
        $region36: #{tpu_custom_call.1} parent=31 // pred_fallthru
          _
        %s233 = sand.u32 %s23, 1
        %s234 = scalar_lea.sflag [#allocation7], %s233
        %s235 = sand.u32 %s69, 1
        %s236 = smul.addr %s235, 192
        %s237 = scalar_lea.vmem [#allocation6], %s236
        // Predicated region
        $region37: #{tpu_custom_call.1} parent=31 // pred_check
          %p238 = pneg %p82
        $region38: #{tpu_custom_call.1} parent=31 // pred_check_branch
          %240 = sbr.rel (%p238) target = $region40
        $region39: #{tpu_custom_call.1} parent=31 // pred_region
          %242 = dma.done %s234, 3072
        $region40: #{tpu_custom_call.1} parent=31 // pred_fallthru
          _
        %s243 = sand.u32 %s23, 1
        %s244 = scalar_lea.sflag [#allocation7], %s243
        %s245 = sand.u32 %s95, 1
        %s246 = scalar_lea.vmem [#allocation8], %s245
        // Predicated region
        $region41: #{tpu_custom_call.1} parent=31 // pred_check
          %p247 = pneg %p108
        $region42: #{tpu_custom_call.1} parent=31 // pred_check_branch
          %249 = sbr.rel (%p247) target = $region44
        $region43: #{tpu_custom_call.1} parent=31 // pred_region
          %251 = dma.done %s244, 16
        $region44: #{tpu_custom_call.1} parent=31 // pred_fallthru
          _
        %s252 = sand.u32 %s43, 1
        %s253 = scalar_lea.sflag [#allocation4], %s252
        %s254 = sand.u32 %s43, 1
        %s255 = smul.addr %s254, 384
        %s256 = scalar_lea.vmem [#allocation3], %s255
        %p257 = pneg %p56
        %p258 = pneg %p53
        %s259 = sand.u32 %s23, 1
        %s260 = scalar_lea.sflag [#allocation7], %s259
        %s261 = sand.u32 %s69, 1
        %s262 = smul.addr %s261, 192
        %s263 = scalar_lea.vmem [#allocation6], %s262
        %p264 = pneg %p82
        %p265 = pneg %p79
        %s266 = sand.u32 %s23, 1
        %s267 = scalar_lea.sflag [#allocation7], %s266
        %s268 = sand.u32 %s95, 1
        %s269 = scalar_lea.vmem [#allocation8], %s268
        %p270 = pneg %p108
        %p271 = pneg %p105
        %p272 = pneg %p136
        %p273 = pneg %p133
        %s274 = sand.u32 %s123, 1
        %s275 = scalar_lea.sflag [#allocation5], %s274
        %s276 = sand.u32 %s123, 1
        %s277 = smul.addr %s276, 128
        %s278 = scalar_lea.vmem [#allocation9], %s277
        %s279 = smul.u32 16, %s27
        %s280 = smul.u32 16, %s27
        %p281 = scmp.eq.s32.totalorder %s28, 0
        // Predicated region
        $region45: #{tpu_custom_call.1} parent=31 // pred_check
          %p282 = pneg %p281
        $region46: #{tpu_custom_call.1} parent=31 // pred_check_branch
          %284 = sbr.rel (%p282) target = $region48
        $region47: #{tpu_custom_call.1} parent=31 // pred_region
          %v285 = vld [vmem:[%s227] sm:$0xff]
          %v286 = vld [vmem:[%s227 + $0x8] sm:$0xff]
          %v287 = vld [vmem:[%s227 + $0x10] sm:$0xff]
          %v288 = vld [vmem:[%s227 + $0x18] sm:$0xff]
          %v289 = vld [vmem:[%s227 + $0x20] sm:$0xff]
          %v290 = vld [vmem:[%s227 + $0x28] sm:$0xff]
          %v291 = vld [vmem:[%s227 + $0x30] sm:$0xff]
          %v292 = vld [vmem:[%s227 + $0x38] sm:$0xff]
          %v293 = vld [vmem:[%s227 + $0x40] sm:$0xff]
          %v294 = vld [vmem:[%s227 + $0x48] sm:$0xff]
          %v295 = vld [vmem:[%s227 + $0x50] sm:$0xff]
          %v296 = vld [vmem:[%s227 + $0x58] sm:$0xff]
          %v297 = vld [vmem:[%s227 + $0x60] sm:$0xff]
          %v298 = vld [vmem:[%s227 + $0x68] sm:$0xff]
          %v299 = vld [vmem:[%s227 + $0x70] sm:$0xff]
          %v300 = vld [vmem:[%s227 + $0x78] sm:$0xff]
          %v301 = vld [vmem:[%s227 + $0x80] sm:$0xff]
          %v302 = vld [vmem:[%s227 + $0x88] sm:$0xff]
          %v303 = vld [vmem:[%s227 + $0x90] sm:$0xff]
          %v304 = vld [vmem:[%s227 + $0x98] sm:$0xff]
          %v305 = vld [vmem:[%s227 + $0xa0] sm:$0xff]
          %v306 = vld [vmem:[%s227 + $0xa8] sm:$0xff]
          %v307 = vld [vmem:[%s227 + $0xb0] sm:$0xff]
          %v308 = vld [vmem:[%s227 + $0xb8] sm:$0xff]
          %v309 = vld [vmem:[%s227 + $0xc0] sm:$0xff]
          %v310 = vld [vmem:[%s227 + $0xc8] sm:$0xff]
          %v311 = vld [vmem:[%s227 + $0xd0] sm:$0xff]
          %v312 = vld [vmem:[%s227 + $0xd8] sm:$0xff]
          %v313 = vld [vmem:[%s227 + $0xe0] sm:$0xff]
          %v314 = vld [vmem:[%s227 + $0xe8] sm:$0xff]
          %v315 = vld [vmem:[%s227 + $0xf0] sm:$0xff]
          %v316 = vld [vmem:[%s227 + $0xf8] sm:$0xff]
          %v317 = vld [vmem:[%s227 + $0x100] sm:$0xff]
          %v318 = vld [vmem:[%s227 + $0x108] sm:$0xff]
          %v319 = vld [vmem:[%s227 + $0x110] sm:$0xff]
          %v320 = vld [vmem:[%s227 + $0x118] sm:$0xff]
          %v321 = vld [vmem:[%s227 + $0x120] sm:$0xff]
          %v322 = vld [vmem:[%s227 + $0x128] sm:$0xff]
          %v323 = vld [vmem:[%s227 + $0x130] sm:$0xff]
          %v324 = vld [vmem:[%s227 + $0x138] sm:$0xff]
          %v325 = vld [vmem:[%s227 + $0x140] sm:$0xff]
          %v326 = vld [vmem:[%s227 + $0x148] sm:$0xff]
          %v327 = vld [vmem:[%s227 + $0x150] sm:$0xff]
          %v328 = vld [vmem:[%s227 + $0x158] sm:$0xff]
          %v329 = vld [vmem:[%s227 + $0x160] sm:$0xff]
          %v330 = vld [vmem:[%s227 + $0x168] sm:$0xff]
          %v331 = vld [vmem:[%s227 + $0x170] sm:$0xff]
          %v332 = vld [vmem:[%s227 + $0x178] sm:$0xff]
          %v333 = vtanh.pop %v285
          %v334 = vtanh.pop %v286
          %v335 = vtanh.pop %v287
          %v336 = vtanh.pop %v288
          %v337 = vtanh.pop %v289
          %v338 = vtanh.pop %v290
          %v339 = vtanh.pop %v291
          %v340 = vtanh.pop %v292
          %v341 = vtanh.pop %v293
          %v342 = vtanh.pop %v294
          %v343 = vtanh.pop %v295
          %v344 = vtanh.pop %v296
          %v345 = vtanh.pop %v297
          %v346 = vtanh.pop %v298
          %v347 = vtanh.pop %v299
          %v348 = vtanh.pop %v300
          %v349 = vtanh.pop %v301
          %v350 = vtanh.pop %v302
          %v351 = vtanh.pop %v303
          %v352 = vtanh.pop %v304
          %v353 = vtanh.pop %v305
          %v354 = vtanh.pop %v306
          %v355 = vtanh.pop %v307
          %v356 = vtanh.pop %v308
          %v357 = vtanh.pop %v309
          %v358 = vtanh.pop %v310
          %v359 = vtanh.pop %v311
          %v360 = vtanh.pop %v312
          %v361 = vtanh.pop %v313
          %v362 = vtanh.pop %v314
          %v363 = vtanh.pop %v315
          %v364 = vtanh.pop %v316
          %v365 = vtanh.pop %v317
          %v366 = vtanh.pop %v318
          %v367 = vtanh.pop %v319
          %v368 = vtanh.pop %v320
          %v369 = vtanh.pop %v321
          %v370 = vtanh.pop %v322
          %v371 = vtanh.pop %v323
          %v372 = vtanh.pop %v324
          %v373 = vtanh.pop %v325
          %v374 = vtanh.pop %v326
          %v375 = vtanh.pop %v327
          %v376 = vtanh.pop %v328
          %v377 = vtanh.pop %v329
          %v378 = vtanh.pop %v330
          %v379 = vtanh.pop %v331
          %v380 = vtanh.pop %v332
          %v381 = vpack.c.bf16 %v334, %v333
          %v382 = vpack.c.bf16 %v335, %v335
          %v383 = vpack.c.bf16 %v337, %v336
          %v384 = vpack.c.bf16 %v338, %v338
          %v385 = vpack.c.bf16 %v340, %v339
          %v386 = vpack.c.bf16 %v341, %v341
          %v387 = vpack.c.bf16 %v343, %v342
          %v388 = vpack.c.bf16 %v344, %v344
          %v389 = vpack.c.bf16 %v346, %v345
          %v390 = vpack.c.bf16 %v347, %v347
          %v391 = vpack.c.bf16 %v349, %v348
          %v392 = vpack.c.bf16 %v350, %v350
          %v393 = vpack.c.bf16 %v352, %v351
          %v394 = vpack.c.bf16 %v353, %v353
          %v395 = vpack.c.bf16 %v355, %v354
          %v396 = vpack.c.bf16 %v356, %v356
          %v397 = vpack.c.bf16 %v358, %v357
          %v398 = vpack.c.bf16 %v359, %v359
          %v399 = vpack.c.bf16 %v361, %v360
          %v400 = vpack.c.bf16 %v362, %v362
          %v401 = vpack.c.bf16 %v364, %v363
          %v402 = vpack.c.bf16 %v365, %v365
          %v403 = vpack.c.bf16 %v367, %v366
          %v404 = vpack.c.bf16 %v368, %v368
          %v405 = vpack.c.bf16 %v370, %v369
          %v406 = vpack.c.bf16 %v371, %v371
          %v407 = vpack.c.bf16 %v373, %v372
          %v408 = vpack.c.bf16 %v374, %v374
          %v409 = vpack.c.bf16 %v376, %v375
          %v410 = vpack.c.bf16 %v377, %v377
          %v411 = vpack.c.bf16 %v379, %v378
          %v412 = vpack.c.bf16 %v380, %v380
          %413 = vst [vmem:[#allocation2] sm:$0xff] %v381
          %414 = vst [vmem:[#allocation2 + $0x8] sm:$0xf] %v382
          %415 = vst [vmem:[#allocation2 + $0xc] sm:$0xff] %v383
          %416 = vst [vmem:[#allocation2 + $0x14] sm:$0xf] %v384
          %417 = vst [vmem:[#allocation2 + $0x18] sm:$0xff] %v385
          %418 = vst [vmem:[#allocation2 + $0x20] sm:$0xf] %v386
          %419 = vst [vmem:[#allocation2 + $0x24] sm:$0xff] %v387
          %420 = vst [vmem:[#allocation2 + $0x2c] sm:$0xf] %v388
          %421 = vst [vmem:[#allocation2 + $0x30] sm:$0xff] %v389
          %422 = vst [vmem:[#allocation2 + $0x38] sm:$0xf] %v390
          %423 = vst [vmem:[#allocation2 + $0x3c] sm:$0xff] %v391
          %424 = vst [vmem:[#allocation2 + $0x44] sm:$0xf] %v392
          %425 = vst [vmem:[#allocation2 + $0x48] sm:$0xff] %v393
          %426 = vst [vmem:[#allocation2 + $0x50] sm:$0xf] %v394
          %427 = vst [vmem:[#allocation2 + $0x54] sm:$0xff] %v395
          %428 = vst [vmem:[#allocation2 + $0x5c] sm:$0xf] %v396
          %429 = vst [vmem:[#allocation2 + $0x60] sm:$0xff] %v397
          %430 = vst [vmem:[#allocation2 + $0x68] sm:$0xf] %v398
          %431 = vst [vmem:[#allocation2 + $0x6c] sm:$0xff] %v399
          %432 = vst [vmem:[#allocation2 + $0x74] sm:$0xf] %v400
          %433 = vst [vmem:[#allocation2 + $0x78] sm:$0xff] %v401
          %434 = vst [vmem:[#allocation2 + $0x80] sm:$0xf] %v402
          %435 = vst [vmem:[#allocation2 + $0x84] sm:$0xff] %v403
          %436 = vst [vmem:[#allocation2 + $0x8c] sm:$0xf] %v404
          %437 = vst [vmem:[#allocation2 + $0x90] sm:$0xff] %v405
          %438 = vst [vmem:[#allocation2 + $0x98] sm:$0xf] %v406
          %439 = vst [vmem:[#allocation2 + $0x9c] sm:$0xff] %v407
          %440 = vst [vmem:[#allocation2 + $0xa4] sm:$0xf] %v408
          %441 = vst [vmem:[#allocation2 + $0xa8] sm:$0xff] %v409
          %442 = vst [vmem:[#allocation2 + $0xb0] sm:$0xf] %v410
          %443 = vst [vmem:[#allocation2 + $0xb4] sm:$0xff] %v411
          %444 = vst [vmem:[#allocation2 + $0xbc] sm:$0xf] %v412
          %v445 = vld [vmem:[%s237] sm:$0xf]
          %v446 = vld [vmem:[%s237 + $0x4] sm:$0xf]
          %v447 = vld [vmem:[%s237 + $0x8] sm:$0xf]
          %v448 = vld [vmem:[%s237 + $0xc] sm:$0xf]
          %v449 = vld [vmem:[%s237 + $0x10] sm:$0xf]
          %v450 = vld [vmem:[%s237 + $0x14] sm:$0xf]
          %v451 = vld [vmem:[%s237 + $0x18] sm:$0xf]
          %v452 = vld [vmem:[%s237 + $0x1c] sm:$0xf]
          %v453 = vld [vmem:[%s237 + $0x20] sm:$0xf]
          %v454 = vld [vmem:[%s237 + $0x24] sm:$0xf]
          %v455 = vld [vmem:[%s237 + $0x28] sm:$0xf]
          %v456 = vld [vmem:[%s237 + $0x2c] sm:$0xf]
          %v457 = vld [vmem:[%s237 + $0x30] sm:$0xf]
          %v458 = vld [vmem:[%s237 + $0x34] sm:$0xf]
          %v459 = vld [vmem:[%s237 + $0x38] sm:$0xf]
          %v460 = vld [vmem:[%s237 + $0x3c] sm:$0xf]
          %v461 = vld [vmem:[%s237 + $0x40] sm:$0xf]
          %v462 = vld [vmem:[%s237 + $0x44] sm:$0xf]
          %v463 = vld [vmem:[%s237 + $0x48] sm:$0xf]
          %v464 = vld [vmem:[%s237 + $0x4c] sm:$0xf]
          %v465 = vld [vmem:[%s237 + $0x50] sm:$0xf]
          %v466 = vld [vmem:[%s237 + $0x54] sm:$0xf]
          %v467 = vld [vmem:[%s237 + $0x58] sm:$0xf]
          %v468 = vld [vmem:[%s237 + $0x5c] sm:$0xf]
          %v469 = vld [vmem:[%s237 + $0x60] sm:$0xf]
          %v470 = vld [vmem:[%s237 + $0x64] sm:$0xf]
          %v471 = vld [vmem:[%s237 + $0x68] sm:$0xf]
          %v472 = vld [vmem:[%s237 + $0x6c] sm:$0xf]
          %v473 = vld [vmem:[%s237 + $0x70] sm:$0xf]
          %v474 = vld [vmem:[%s237 + $0x74] sm:$0xf]
          %v475 = vld [vmem:[%s237 + $0x78] sm:$0xf]
          %v476 = vld [vmem:[%s237 + $0x7c] sm:$0xf]
          %v477 = vld [vmem:[%s237 + $0x80] sm:$0xf]
          %v478 = vld [vmem:[%s237 + $0x84] sm:$0xf]
          %v479 = vld [vmem:[%s237 + $0x88] sm:$0xf]
          %v480 = vld [vmem:[%s237 + $0x8c] sm:$0xf]
          %v481 = vld [vmem:[%s237 + $0x90] sm:$0xf]
          %v482 = vld [vmem:[%s237 + $0x94] sm:$0xf]
          %v483 = vld [vmem:[%s237 + $0x98] sm:$0xf]
          %v484 = vld [vmem:[%s237 + $0x9c] sm:$0xf]
          %v485 = vld [vmem:[%s237 + $0xa0] sm:$0xf]
          %v486 = vld [vmem:[%s237 + $0xa4] sm:$0xf]
          %v487 = vld [vmem:[%s237 + $0xa8] sm:$0xf]
          %v488 = vld [vmem:[%s237 + $0xac] sm:$0xf]
          %v489 = vld [vmem:[%s237 + $0xb0] sm:$0xf]
          %v490 = vld [vmem:[%s237 + $0xb4] sm:$0xf]
          %v491 = vld [vmem:[%s237 + $0xb8] sm:$0xf]
          %v492 = vld [vmem:[%s237 + $0xbc] sm:$0xf]
          %v493 = vld [vmem:[%s246] sm:$0x1]
          %v495 = vperm.slane %v493, 0
          %v529 = vunpack.c.l.b16 %v381
          %v530 = vunpack.c.h.b16 %v381
          %v531 = vunpack.c.l.b16 %v382
          %v532 = vunpack.c.l.b16 %v383
          %v533 = vunpack.c.h.b16 %v383
          %v534 = vunpack.c.l.b16 %v384
          %v535 = vunpack.c.l.b16 %v385
          %v536 = vunpack.c.h.b16 %v385
          %v537 = vunpack.c.l.b16 %v386
          %v538 = vunpack.c.l.b16 %v387
          %v539 = vunpack.c.h.b16 %v387
          %v540 = vunpack.c.l.b16 %v388
          %v541 = vunpack.c.l.b16 %v389
          %v542 = vunpack.c.h.b16 %v389
          %v543 = vunpack.c.l.b16 %v390
          %v544 = vunpack.c.l.b16 %v391
          %v545 = vunpack.c.h.b16 %v391
          %v546 = vunpack.c.l.b16 %v392
          %v547 = vunpack.c.l.b16 %v393
          %v548 = vunpack.c.h.b16 %v393
          %v549 = vunpack.c.l.b16 %v394
          %v550 = vunpack.c.l.b16 %v395
          %v551 = vunpack.c.h.b16 %v395
          %v552 = vunpack.c.l.b16 %v396
          %v553 = vunpack.c.l.b16 %v397
          %v554 = vunpack.c.h.b16 %v397
          %v555 = vunpack.c.l.b16 %v398
          %v556 = vunpack.c.l.b16 %v399
          %v557 = vunpack.c.h.b16 %v399
          %v558 = vunpack.c.l.b16 %v400
          %v559 = vunpack.c.l.b16 %v401
          %v560 = vunpack.c.h.b16 %v401
          %v561 = vunpack.c.l.b16 %v402
          %v562 = vunpack.c.l.b16 %v403
          %v563 = vunpack.c.h.b16 %v403
          %v564 = vunpack.c.l.b16 %v404
          %v565 = vunpack.c.l.b16 %v405
          %v566 = vunpack.c.h.b16 %v405
          %v567 = vunpack.c.l.b16 %v406
          %v568 = vunpack.c.l.b16 %v407
          %v569 = vunpack.c.h.b16 %v407
          %v570 = vunpack.c.l.b16 %v408
          %v571 = vunpack.c.l.b16 %v409
          %v572 = vunpack.c.h.b16 %v409
          %v573 = vunpack.c.l.b16 %v410
          %v574 = vunpack.c.l.b16 %v411
          %v575 = vunpack.c.h.b16 %v411
          %v576 = vunpack.c.l.b16 %v412
          %v577 = vpack.c.b16 %v532, %v529
          %v578 = vpack.c.b16 %v533, %v530
          %v579 = vpack.c.b16 %v534, %v531
          %v580 = vpack.c.b16 %v538, %v535
          %v581 = vpack.c.b16 %v539, %v536
          %v582 = vpack.c.b16 %v540, %v537
          %v583 = vpack.c.b16 %v544, %v541
          %v584 = vpack.c.b16 %v545, %v542
          %v585 = vpack.c.b16 %v546, %v543
          %v586 = vpack.c.b16 %v550, %v547
          %v587 = vpack.c.b16 %v551, %v548
          %v588 = vpack.c.b16 %v552, %v549
          %v589 = vpack.c.b16 %v556, %v553
          %v590 = vpack.c.b16 %v557, %v554
          %v591 = vpack.c.b16 %v558, %v555
          %v592 = vpack.c.b16 %v562, %v559
          %v593 = vpack.c.b16 %v563, %v560
          %v594 = vpack.c.b16 %v564, %v561
          %v595 = vpack.c.b16 %v568, %v565
          %v596 = vpack.c.b16 %v569, %v566
          %v597 = vpack.c.b16 %v570, %v567
          %v598 = vpack.c.b16 %v574, %v571
          %v599 = vpack.c.b16 %v575, %v572
          %v600 = vpack.c.b16 %v576, %v573
          %v673 = vunpack.c.l.b16 %v445
          %v674 = vunpack.c.l.b16 %v446
          %v675 = vunpack.c.l.b16 %v447
          %v676 = vunpack.c.l.b16 %v448
          %v677 = vunpack.c.l.b16 %v449
          %v678 = vunpack.c.l.b16 %v450
          %v679 = vunpack.c.l.b16 %v451
          %v680 = vunpack.c.l.b16 %v452
          %v681 = vunpack.c.l.b16 %v453
          %v682 = vunpack.c.l.b16 %v454
          %v683 = vunpack.c.l.b16 %v455
          %v684 = vunpack.c.l.b16 %v456
          %v685 = vunpack.c.l.b16 %v457
          %v686 = vunpack.c.l.b16 %v458
          %v687 = vunpack.c.l.b16 %v459
          %v688 = vunpack.c.l.b16 %v460
          %v689 = vunpack.c.l.b16 %v461
          %v690 = vunpack.c.l.b16 %v462
          %v691 = vunpack.c.l.b16 %v463
          %v692 = vunpack.c.l.b16 %v464
          %v693 = vunpack.c.l.b16 %v465
          %v694 = vunpack.c.l.b16 %v466
          %v695 = vunpack.c.l.b16 %v467
          %v696 = vunpack.c.l.b16 %v468
          %v697 = vunpack.c.l.b16 %v469
          %v698 = vunpack.c.l.b16 %v470
          %v699 = vunpack.c.l.b16 %v471
          %v700 = vunpack.c.l.b16 %v472
          %v701 = vunpack.c.l.b16 %v473
          %v702 = vunpack.c.l.b16 %v474
          %v703 = vunpack.c.l.b16 %v475
          %v704 = vunpack.c.l.b16 %v476
          %v705 = vunpack.c.l.b16 %v477
          %v706 = vunpack.c.l.b16 %v478
          %v707 = vunpack.c.l.b16 %v479
          %v708 = vunpack.c.l.b16 %v480
          %v709 = vunpack.c.l.b16 %v481
          %v710 = vunpack.c.l.b16 %v482
          %v711 = vunpack.c.l.b16 %v483
          %v712 = vunpack.c.l.b16 %v484
          %v713 = vunpack.c.l.b16 %v485
          %v714 = vunpack.c.l.b16 %v486
          %v715 = vunpack.c.l.b16 %v487
          %v716 = vunpack.c.l.b16 %v488
          %v717 = vunpack.c.l.b16 %v489
          %v718 = vunpack.c.l.b16 %v490
          %v719 = vunpack.c.l.b16 %v491
          %v720 = vunpack.c.l.b16 %v492
          %v721 = vpack.c.b16 %v674, %v673
          %v722 = vpack.c.b16 %v676, %v675
          %v723 = vpack.c.b16 %v678, %v677
          %v724 = vpack.c.b16 %v680, %v679
          %v725 = vpack.c.b16 %v682, %v681
          %v726 = vpack.c.b16 %v684, %v683
          %v727 = vpack.c.b16 %v686, %v685
          %v728 = vpack.c.b16 %v688, %v687
          %v729 = vpack.c.b16 %v690, %v689
          %v730 = vpack.c.b16 %v692, %v691
          %v731 = vpack.c.b16 %v694, %v693
          %v732 = vpack.c.b16 %v696, %v695
          %v733 = vpack.c.b16 %v698, %v697
          %v734 = vpack.c.b16 %v700, %v699
          %v735 = vpack.c.b16 %v702, %v701
          %v736 = vpack.c.b16 %v704, %v703
          %v737 = vpack.c.b16 %v706, %v705
          %v738 = vpack.c.b16 %v708, %v707
          %v739 = vpack.c.b16 %v710, %v709
          %v740 = vpack.c.b16 %v712, %v711
          %v741 = vpack.c.b16 %v714, %v713
          %v742 = vpack.c.b16 %v716, %v715
          %v743 = vpack.c.b16 %v718, %v717
          %v744 = vpack.c.b16 %v720, %v719
          %769 = vmatpush.bf16.msra.mxu0 %v728
          %770 = vmatpush.bf16.msra.mxu0 %v727
          %771 = vmatpush.bf16.msra.mxu0 %v726
          %772 = vmatpush.bf16.msra.mxu0 %v725
          %773 = vmatpush.bf16.msra.mxu0 %v724
          %774 = vmatpush.bf16.msra.mxu0 %v723
          %775 = vmatpush.bf16.msra.mxu0 %v722
          %776 = vmatpush.bf16.msra.mxu0 %v721
          %777 = vmatmul.bf16.gmra.mxu0 %v577
          %v778 = vpop.f32.mrf.mxu0
          %v779 = vadd.f32 %v495, %v778
          %v780 = vpop.f32.mrf.mxu0
          %v781 = vadd.f32 %v495, %v780
          %782 = vmatmul.bf16.gmra.mxu0 %v580
          %v783 = vpop.f32.mrf.mxu0
          %v784 = vadd.f32 %v495, %v783
          %v785 = vpop.f32.mrf.mxu0
          %v786 = vadd.f32 %v495, %v785
          %787 = vmatmul.bf16.gmra.mxu0 %v583
          %v788 = vpop.f32.mrf.mxu0
          %v789 = vadd.f32 %v495, %v788
          %v790 = vpop.f32.mrf.mxu0
          %v791 = vadd.f32 %v495, %v790
          %792 = vmatmul.bf16.gmra.mxu0 %v586
          %v793 = vpop.f32.mrf.mxu0
          %v794 = vadd.f32 %v495, %v793
          %v795 = vpop.f32.mrf.mxu0
          %v796 = vadd.f32 %v495, %v795
          %797 = vmatmul.bf16.gmra.mxu0 %v589
          %v798 = vpop.f32.mrf.mxu0
          %v799 = vadd.f32 %v495, %v798
          %v800 = vpop.f32.mrf.mxu0
          %v801 = vadd.f32 %v495, %v800
          %802 = vmatmul.bf16.gmra.mxu0 %v592
          %v803 = vpop.f32.mrf.mxu0
          %v804 = vadd.f32 %v495, %v803
          %v805 = vpop.f32.mrf.mxu0
          %v806 = vadd.f32 %v495, %v805
          %807 = vmatmul.bf16.gmra.mxu0 %v595
          %v808 = vpop.f32.mrf.mxu0
          %v809 = vadd.f32 %v495, %v808
          %v810 = vpop.f32.mrf.mxu0
          %v811 = vadd.f32 %v495, %v810
          %812 = vmatmul.bf16.gmra.mxu0 %v598
          %v813 = vpop.f32.mrf.mxu0
          %v814 = vadd.f32 %v495, %v813
          %v815 = vpop.f32.mrf.mxu0
          %v816 = vadd.f32 %v495, %v815
          %817 = vdwg.mxu0
          %818 = vmatpush.bf16.msra.mxu0 %v736
          %819 = vmatpush.bf16.msra.mxu0 %v735
          %820 = vmatpush.bf16.msra.mxu0 %v734
          %821 = vmatpush.bf16.msra.mxu0 %v733
          %822 = vmatpush.bf16.msra.mxu0 %v732
          %823 = vmatpush.bf16.msra.mxu0 %v731
          %824 = vmatpush.bf16.msra.mxu0 %v730
          %825 = vmatpush.bf16.msra.mxu0 %v729
          %826 = vmatmul.bf16.gmra.mxu0 %v578
          %v827 = vpop.f32.mrf.mxu0
          %v828 = vadd.f32 %v779, %v827
          %v829 = vpop.f32.mrf.mxu0
          %v830 = vadd.f32 %v781, %v829
          %831 = vmatmul.bf16.gmra.mxu0 %v581
          %v832 = vpop.f32.mrf.mxu0
          %v833 = vadd.f32 %v784, %v832
          %v834 = vpop.f32.mrf.mxu0
          %v835 = vadd.f32 %v786, %v834
          %836 = vmatmul.bf16.gmra.mxu0 %v584
          %v837 = vpop.f32.mrf.mxu0
          %v838 = vadd.f32 %v789, %v837
          %v839 = vpop.f32.mrf.mxu0
          %v840 = vadd.f32 %v791, %v839
          %841 = vmatmul.bf16.gmra.mxu0 %v587
          %v842 = vpop.f32.mrf.mxu0
          %v843 = vadd.f32 %v794, %v842
          %v844 = vpop.f32.mrf.mxu0
          %v845 = vadd.f32 %v796, %v844
          %846 = vmatmul.bf16.gmra.mxu0 %v590
          %v847 = vpop.f32.mrf.mxu0
          %v848 = vadd.f32 %v799, %v847
          %v849 = vpop.f32.mrf.mxu0
          %v850 = vadd.f32 %v801, %v849
          %851 = vmatmul.bf16.gmra.mxu0 %v593
          %v852 = vpop.f32.mrf.mxu0
          %v853 = vadd.f32 %v804, %v852
          %v854 = vpop.f32.mrf.mxu0
          %v855 = vadd.f32 %v806, %v854
          %856 = vmatmul.bf16.gmra.mxu0 %v596
          %v857 = vpop.f32.mrf.mxu0
          %v858 = vadd.f32 %v809, %v857
          %v859 = vpop.f32.mrf.mxu0
          %v860 = vadd.f32 %v811, %v859
          %861 = vmatmul.bf16.gmra.mxu0 %v599
          %v862 = vpop.f32.mrf.mxu0
          %v863 = vadd.f32 %v814, %v862
          %v864 = vpop.f32.mrf.mxu0
          %v865 = vadd.f32 %v816, %v864
          %866 = vdwg.mxu0
          %867 = vmatpush.bf16.msra.mxu0 %v744
          %868 = vmatpush.bf16.msra.mxu0 %v743
          %869 = vmatpush.bf16.msra.mxu0 %v742
          %870 = vmatpush.bf16.msra.mxu0 %v741
          %871 = vmatpush.bf16.msra.mxu0 %v740
          %872 = vmatpush.bf16.msra.mxu0 %v739
          %873 = vmatpush.bf16.msra.mxu0 %v738
          %874 = vmatpush.bf16.msra.mxu0 %v737
          %875 = vmatmul.bf16.gmra.mxu0 %v579
          %v876 = vpop.f32.mrf.mxu0
          %v877 = vadd.f32 %v828, %v876
          %v878 = vpop.f32.mrf.mxu0
          %v879 = vadd.f32 %v830, %v878
          %880 = vmatmul.bf16.gmra.mxu0 %v582
          %v881 = vpop.f32.mrf.mxu0
          %v882 = vadd.f32 %v833, %v881
          %v883 = vpop.f32.mrf.mxu0
          %v884 = vadd.f32 %v835, %v883
          %885 = vmatmul.bf16.gmra.mxu0 %v585
          %v886 = vpop.f32.mrf.mxu0
          %v887 = vadd.f32 %v838, %v886
          %v888 = vpop.f32.mrf.mxu0
          %v889 = vadd.f32 %v840, %v888
          %890 = vmatmul.bf16.gmra.mxu0 %v588
          %v891 = vpop.f32.mrf.mxu0
          %v892 = vadd.f32 %v843, %v891
          %v893 = vpop.f32.mrf.mxu0
          %v894 = vadd.f32 %v845, %v893
          %895 = vmatmul.bf16.gmra.mxu0 %v591
          %v896 = vpop.f32.mrf.mxu0
          %v897 = vadd.f32 %v848, %v896
          %v898 = vpop.f32.mrf.mxu0
          %v899 = vadd.f32 %v850, %v898
          %900 = vmatmul.bf16.gmra.mxu0 %v594
          %v901 = vpop.f32.mrf.mxu0
          %v902 = vadd.f32 %v853, %v901
          %v903 = vpop.f32.mrf.mxu0
          %v904 = vadd.f32 %v855, %v903
          %905 = vmatmul.bf16.gmra.mxu0 %v597
          %v906 = vpop.f32.mrf.mxu0
          %v907 = vadd.f32 %v858, %v906
          %v908 = vpop.f32.mrf.mxu0
          %v909 = vadd.f32 %v860, %v908
          %910 = vmatmul.bf16.gmra.mxu0 %v600
          %v911 = vpop.f32.mrf.mxu0
          %v912 = vadd.f32 %v863, %v911
          %v913 = vpop.f32.mrf.mxu0
          %v914 = vadd.f32 %v865, %v913
          %915 = vdwg.mxu0
          %916 = vst [vmem:[%s278] sm:$0xff] %v877
          %917 = vst [vmem:[%s278 + $0x8] sm:$0xff] %v879
          %918 = vst [vmem:[%s278 + $0x10] sm:$0xff] %v882
          %919 = vst [vmem:[%s278 + $0x18] sm:$0xff] %v884
          %920 = vst [vmem:[%s278 + $0x20] sm:$0xff] %v887
          %921 = vst [vmem:[%s278 + $0x28] sm:$0xff] %v889
          %922 = vst [vmem:[%s278 + $0x30] sm:$0xff] %v892
          %923 = vst [vmem:[%s278 + $0x38] sm:$0xff] %v894
          %924 = vst [vmem:[%s278 + $0x40] sm:$0xff] %v897
          %925 = vst [vmem:[%s278 + $0x48] sm:$0xff] %v899
          %926 = vst [vmem:[%s278 + $0x50] sm:$0xff] %v902
          %927 = vst [vmem:[%s278 + $0x58] sm:$0xff] %v904
          %928 = vst [vmem:[%s278 + $0x60] sm:$0xff] %v907
          %929 = vst [vmem:[%s278 + $0x68] sm:$0xff] %v909
          %930 = vst [vmem:[%s278 + $0x70] sm:$0xff] %v912
          %931 = vst [vmem:[%s278 + $0x78] sm:$0xff] %v914
        $region48: #{tpu_custom_call.1} parent=31 // pred_fallthru
          _
        %p932 = scmp.gt.s32.totalorder %s28, 0
        // Predicated region
        $region49: #{tpu_custom_call.1} parent=31 // pred_check
          %p933 = pneg %p932
        $region50: #{tpu_custom_call.1} parent=31 // pred_check_branch
          %935 = sbr.rel (%p933) target = $region52
        $region51: #{tpu_custom_call.1} parent=31 // pred_region
          %v936 = vld [vmem:[#allocation2] sm:$0xff]
          %v937 = vld [vmem:[#allocation2 + $0x8] sm:$0xf]
          %v938 = vld [vmem:[#allocation2 + $0xc] sm:$0xff]
          %v939 = vld [vmem:[#allocation2 + $0x14] sm:$0xf]
          %v940 = vld [vmem:[#allocation2 + $0x18] sm:$0xff]
          %v941 = vld [vmem:[#allocation2 + $0x20] sm:$0xf]
          %v942 = vld [vmem:[#allocation2 + $0x24] sm:$0xff]
          %v943 = vld [vmem:[#allocation2 + $0x2c] sm:$0xf]
          %v944 = vld [vmem:[#allocation2 + $0x30] sm:$0xff]
          %v945 = vld [vmem:[#allocation2 + $0x38] sm:$0xf]
          %v946 = vld [vmem:[#allocation2 + $0x3c] sm:$0xff]
          %v947 = vld [vmem:[#allocation2 + $0x44] sm:$0xf]
          %v948 = vld [vmem:[#allocation2 + $0x48] sm:$0xff]
          %v949 = vld [vmem:[#allocation2 + $0x50] sm:$0xf]
          %v950 = vld [vmem:[#allocation2 + $0x54] sm:$0xff]
          %v951 = vld [vmem:[#allocation2 + $0x5c] sm:$0xf]
          %v952 = vld [vmem:[#allocation2 + $0x60] sm:$0xff]
          %v953 = vld [vmem:[#allocation2 + $0x68] sm:$0xf]
          %v954 = vld [vmem:[#allocation2 + $0x6c] sm:$0xff]
          %v955 = vld [vmem:[#allocation2 + $0x74] sm:$0xf]
          %v956 = vld [vmem:[#allocation2 + $0x78] sm:$0xff]
          %v957 = vld [vmem:[#allocation2 + $0x80] sm:$0xf]
          %v958 = vld [vmem:[#allocation2 + $0x84] sm:$0xff]
          %v959 = vld [vmem:[#allocation2 + $0x8c] sm:$0xf]
          %v960 = vld [vmem:[#allocation2 + $0x90] sm:$0xff]
          %v961 = vld [vmem:[#allocation2 + $0x98] sm:$0xf]
          %v962 = vld [vmem:[#allocation2 + $0x9c] sm:$0xff]
          %v963 = vld [vmem:[#allocation2 + $0xa4] sm:$0xf]
          %v964 = vld [vmem:[#allocation2 + $0xa8] sm:$0xff]
          %v965 = vld [vmem:[#allocation2 + $0xb0] sm:$0xf]
          %v966 = vld [vmem:[#allocation2 + $0xb4] sm:$0xff]
          %v967 = vld [vmem:[#allocation2 + $0xbc] sm:$0xf]
          %v968 = vld [vmem:[%s237] sm:$0xf]
          %v969 = vld [vmem:[%s237 + $0x4] sm:$0xf]
          %v970 = vld [vmem:[%s237 + $0x8] sm:$0xf]
          %v971 = vld [vmem:[%s237 + $0xc] sm:$0xf]
          %v972 = vld [vmem:[%s237 + $0x10] sm:$0xf]
          %v973 = vld [vmem:[%s237 + $0x14] sm:$0xf]
          %v974 = vld [vmem:[%s237 + $0x18] sm:$0xf]
          %v975 = vld [vmem:[%s237 + $0x1c] sm:$0xf]
          %v976 = vld [vmem:[%s237 + $0x20] sm:$0xf]
          %v977 = vld [vmem:[%s237 + $0x24] sm:$0xf]
          %v978 = vld [vmem:[%s237 + $0x28] sm:$0xf]
          %v979 = vld [vmem:[%s237 + $0x2c] sm:$0xf]
          %v980 = vld [vmem:[%s237 + $0x30] sm:$0xf]
          %v981 = vld [vmem:[%s237 + $0x34] sm:$0xf]
          %v982 = vld [vmem:[%s237 + $0x38] sm:$0xf]
          %v983 = vld [vmem:[%s237 + $0x3c] sm:$0xf]
          %v984 = vld [vmem:[%s237 + $0x40] sm:$0xf]
          %v985 = vld [vmem:[%s237 + $0x44] sm:$0xf]
          %v986 = vld [vmem:[%s237 + $0x48] sm:$0xf]
          %v987 = vld [vmem:[%s237 + $0x4c] sm:$0xf]
          %v988 = vld [vmem:[%s237 + $0x50] sm:$0xf]
          %v989 = vld [vmem:[%s237 + $0x54] sm:$0xf]
          %v990 = vld [vmem:[%s237 + $0x58] sm:$0xf]
          %v991 = vld [vmem:[%s237 + $0x5c] sm:$0xf]
          %v992 = vld [vmem:[%s237 + $0x60] sm:$0xf]
          %v993 = vld [vmem:[%s237 + $0x64] sm:$0xf]
          %v994 = vld [vmem:[%s237 + $0x68] sm:$0xf]
          %v995 = vld [vmem:[%s237 + $0x6c] sm:$0xf]
          %v996 = vld [vmem:[%s237 + $0x70] sm:$0xf]
          %v997 = vld [vmem:[%s237 + $0x74] sm:$0xf]
          %v998 = vld [vmem:[%s237 + $0x78] sm:$0xf]
          %v999 = vld [vmem:[%s237 + $0x7c] sm:$0xf]
          %v1000 = vld [vmem:[%s237 + $0x80] sm:$0xf]
          %v1001 = vld [vmem:[%s237 + $0x84] sm:$0xf]
          %v1002 = vld [vmem:[%s237 + $0x88] sm:$0xf]
          %v1003 = vld [vmem:[%s237 + $0x8c] sm:$0xf]
          %v1004 = vld [vmem:[%s237 + $0x90] sm:$0xf]
          %v1005 = vld [vmem:[%s237 + $0x94] sm:$0xf]
          %v1006 = vld [vmem:[%s237 + $0x98] sm:$0xf]
          %v1007 = vld [vmem:[%s237 + $0x9c] sm:$0xf]
          %v1008 = vld [vmem:[%s237 + $0xa0] sm:$0xf]
          %v1009 = vld [vmem:[%s237 + $0xa4] sm:$0xf]
          %v1010 = vld [vmem:[%s237 + $0xa8] sm:$0xf]
          %v1011 = vld [vmem:[%s237 + $0xac] sm:$0xf]
          %v1012 = vld [vmem:[%s237 + $0xb0] sm:$0xf]
          %v1013 = vld [vmem:[%s237 + $0xb4] sm:$0xf]
          %v1014 = vld [vmem:[%s237 + $0xb8] sm:$0xf]
          %v1015 = vld [vmem:[%s237 + $0xbc] sm:$0xf]
          %v1016 = vld [vmem:[%s246] sm:$0x1]
          %v1018 = vperm.slane %v1016, 0
          %v1052 = vunpack.c.l.b16 %v936
          %v1053 = vunpack.c.h.b16 %v936
          %v1054 = vunpack.c.l.b16 %v937
          %v1055 = vunpack.c.l.b16 %v938
          %v1056 = vunpack.c.h.b16 %v938
          %v1057 = vunpack.c.l.b16 %v939
          %v1058 = vunpack.c.l.b16 %v940
          %v1059 = vunpack.c.h.b16 %v940
          %v1060 = vunpack.c.l.b16 %v941
          %v1061 = vunpack.c.l.b16 %v942
          %v1062 = vunpack.c.h.b16 %v942
          %v1063 = vunpack.c.l.b16 %v943
          %v1064 = vunpack.c.l.b16 %v944
          %v1065 = vunpack.c.h.b16 %v944
          %v1066 = vunpack.c.l.b16 %v945
          %v1067 = vunpack.c.l.b16 %v946
          %v1068 = vunpack.c.h.b16 %v946
          %v1069 = vunpack.c.l.b16 %v947
          %v1070 = vunpack.c.l.b16 %v948
          %v1071 = vunpack.c.h.b16 %v948
          %v1072 = vunpack.c.l.b16 %v949
          %v1073 = vunpack.c.l.b16 %v950
          %v1074 = vunpack.c.h.b16 %v950
          %v1075 = vunpack.c.l.b16 %v951
          %v1076 = vunpack.c.l.b16 %v952
          %v1077 = vunpack.c.h.b16 %v952
          %v1078 = vunpack.c.l.b16 %v953
          %v1079 = vunpack.c.l.b16 %v954
          %v1080 = vunpack.c.h.b16 %v954
          %v1081 = vunpack.c.l.b16 %v955
          %v1082 = vunpack.c.l.b16 %v956
          %v1083 = vunpack.c.h.b16 %v956
          %v1084 = vunpack.c.l.b16 %v957
          %v1085 = vunpack.c.l.b16 %v958
          %v1086 = vunpack.c.h.b16 %v958
          %v1087 = vunpack.c.l.b16 %v959
          %v1088 = vunpack.c.l.b16 %v960
          %v1089 = vunpack.c.h.b16 %v960
          %v1090 = vunpack.c.l.b16 %v961
          %v1091 = vunpack.c.l.b16 %v962
          %v1092 = vunpack.c.h.b16 %v962
          %v1093 = vunpack.c.l.b16 %v963
          %v1094 = vunpack.c.l.b16 %v964
          %v1095 = vunpack.c.h.b16 %v964
          %v1096 = vunpack.c.l.b16 %v965
          %v1097 = vunpack.c.l.b16 %v966
          %v1098 = vunpack.c.h.b16 %v966
          %v1099 = vunpack.c.l.b16 %v967
          %v1100 = vpack.c.b16 %v1055, %v1052
          %v1101 = vpack.c.b16 %v1056, %v1053
          %v1102 = vpack.c.b16 %v1057, %v1054
          %v1103 = vpack.c.b16 %v1061, %v1058
          %v1104 = vpack.c.b16 %v1062, %v1059
          %v1105 = vpack.c.b16 %v1063, %v1060
          %v1106 = vpack.c.b16 %v1067, %v1064
          %v1107 = vpack.c.b16 %v1068, %v1065
          %v1108 = vpack.c.b16 %v1069, %v1066
          %v1109 = vpack.c.b16 %v1073, %v1070
          %v1110 = vpack.c.b16 %v1074, %v1071
          %v1111 = vpack.c.b16 %v1075, %v1072
          %v1112 = vpack.c.b16 %v1079, %v1076
          %v1113 = vpack.c.b16 %v1080, %v1077
          %v1114 = vpack.c.b16 %v1081, %v1078
          %v1115 = vpack.c.b16 %v1085, %v1082
          %v1116 = vpack.c.b16 %v1086, %v1083
          %v1117 = vpack.c.b16 %v1087, %v1084
          %v1118 = vpack.c.b16 %v1091, %v1088
          %v1119 = vpack.c.b16 %v1092, %v1089
          %v1120 = vpack.c.b16 %v1093, %v1090
          %v1121 = vpack.c.b16 %v1097, %v1094
          %v1122 = vpack.c.b16 %v1098, %v1095
          %v1123 = vpack.c.b16 %v1099, %v1096
          %v1196 = vunpack.c.l.b16 %v968
          %v1197 = vunpack.c.l.b16 %v969
          %v1198 = vunpack.c.l.b16 %v970
          %v1199 = vunpack.c.l.b16 %v971
          %v1200 = vunpack.c.l.b16 %v972
          %v1201 = vunpack.c.l.b16 %v973
          %v1202 = vunpack.c.l.b16 %v974
          %v1203 = vunpack.c.l.b16 %v975
          %v1204 = vunpack.c.l.b16 %v976
          %v1205 = vunpack.c.l.b16 %v977
          %v1206 = vunpack.c.l.b16 %v978
          %v1207 = vunpack.c.l.b16 %v979
          %v1208 = vunpack.c.l.b16 %v980
          %v1209 = vunpack.c.l.b16 %v981
          %v1210 = vunpack.c.l.b16 %v982
          %v1211 = vunpack.c.l.b16 %v983
          %v1212 = vunpack.c.l.b16 %v984
          %v1213 = vunpack.c.l.b16 %v985
          %v1214 = vunpack.c.l.b16 %v986
          %v1215 = vunpack.c.l.b16 %v987
          %v1216 = vunpack.c.l.b16 %v988
          %v1217 = vunpack.c.l.b16 %v989
          %v1218 = vunpack.c.l.b16 %v990
          %v1219 = vunpack.c.l.b16 %v991
          %v1220 = vunpack.c.l.b16 %v992
          %v1221 = vunpack.c.l.b16 %v993
          %v1222 = vunpack.c.l.b16 %v994
          %v1223 = vunpack.c.l.b16 %v995
          %v1224 = vunpack.c.l.b16 %v996
          %v1225 = vunpack.c.l.b16 %v997
          %v1226 = vunpack.c.l.b16 %v998
          %v1227 = vunpack.c.l.b16 %v999
          %v1228 = vunpack.c.l.b16 %v1000
          %v1229 = vunpack.c.l.b16 %v1001
          %v1230 = vunpack.c.l.b16 %v1002
          %v1231 = vunpack.c.l.b16 %v1003
          %v1232 = vunpack.c.l.b16 %v1004
          %v1233 = vunpack.c.l.b16 %v1005
          %v1234 = vunpack.c.l.b16 %v1006
          %v1235 = vunpack.c.l.b16 %v1007
          %v1236 = vunpack.c.l.b16 %v1008
          %v1237 = vunpack.c.l.b16 %v1009
          %v1238 = vunpack.c.l.b16 %v1010
          %v1239 = vunpack.c.l.b16 %v1011
          %v1240 = vunpack.c.l.b16 %v1012
          %v1241 = vunpack.c.l.b16 %v1013
          %v1242 = vunpack.c.l.b16 %v1014
          %v1243 = vunpack.c.l.b16 %v1015
          %v1244 = vpack.c.b16 %v1197, %v1196
          %v1245 = vpack.c.b16 %v1199, %v1198
          %v1246 = vpack.c.b16 %v1201, %v1200
          %v1247 = vpack.c.b16 %v1203, %v1202
          %v1248 = vpack.c.b16 %v1205, %v1204
          %v1249 = vpack.c.b16 %v1207, %v1206
          %v1250 = vpack.c.b16 %v1209, %v1208
          %v1251 = vpack.c.b16 %v1211, %v1210
          %v1252 = vpack.c.b16 %v1213, %v1212
          %v1253 = vpack.c.b16 %v1215, %v1214
          %v1254 = vpack.c.b16 %v1217, %v1216
          %v1255 = vpack.c.b16 %v1219, %v1218
          %v1256 = vpack.c.b16 %v1221, %v1220
          %v1257 = vpack.c.b16 %v1223, %v1222
          %v1258 = vpack.c.b16 %v1225, %v1224
          %v1259 = vpack.c.b16 %v1227, %v1226
          %v1260 = vpack.c.b16 %v1229, %v1228
          %v1261 = vpack.c.b16 %v1231, %v1230
          %v1262 = vpack.c.b16 %v1233, %v1232
          %v1263 = vpack.c.b16 %v1235, %v1234
          %v1264 = vpack.c.b16 %v1237, %v1236
          %v1265 = vpack.c.b16 %v1239, %v1238
          %v1266 = vpack.c.b16 %v1241, %v1240
          %v1267 = vpack.c.b16 %v1243, %v1242
          %1292 = vmatpush.bf16.msra.mxu0 %v1251
          %1293 = vmatpush.bf16.msra.mxu0 %v1250
          %1294 = vmatpush.bf16.msra.mxu0 %v1249
          %1295 = vmatpush.bf16.msra.mxu0 %v1248
          %1296 = vmatpush.bf16.msra.mxu0 %v1247
          %1297 = vmatpush.bf16.msra.mxu0 %v1246
          %1298 = vmatpush.bf16.msra.mxu0 %v1245
          %1299 = vmatpush.bf16.msra.mxu0 %v1244
          %1300 = vmatmul.bf16.gmra.mxu0 %v1100
          %v1301 = vpop.f32.mrf.mxu0
          %v1302 = vadd.f32 %v1018, %v1301
          %v1303 = vpop.f32.mrf.mxu0
          %v1304 = vadd.f32 %v1018, %v1303
          %1305 = vmatmul.bf16.gmra.mxu0 %v1103
          %v1306 = vpop.f32.mrf.mxu0
          %v1307 = vadd.f32 %v1018, %v1306
          %v1308 = vpop.f32.mrf.mxu0
          %v1309 = vadd.f32 %v1018, %v1308
          %1310 = vmatmul.bf16.gmra.mxu0 %v1106
          %v1311 = vpop.f32.mrf.mxu0
          %v1312 = vadd.f32 %v1018, %v1311
          %v1313 = vpop.f32.mrf.mxu0
          %v1314 = vadd.f32 %v1018, %v1313
          %1315 = vmatmul.bf16.gmra.mxu0 %v1109
          %v1316 = vpop.f32.mrf.mxu0
          %v1317 = vadd.f32 %v1018, %v1316
          %v1318 = vpop.f32.mrf.mxu0
          %v1319 = vadd.f32 %v1018, %v1318
          %1320 = vmatmul.bf16.gmra.mxu0 %v1112
          %v1321 = vpop.f32.mrf.mxu0
          %v1322 = vadd.f32 %v1018, %v1321
          %v1323 = vpop.f32.mrf.mxu0
          %v1324 = vadd.f32 %v1018, %v1323
          %1325 = vmatmul.bf16.gmra.mxu0 %v1115
          %v1326 = vpop.f32.mrf.mxu0
          %v1327 = vadd.f32 %v1018, %v1326
          %v1328 = vpop.f32.mrf.mxu0
          %v1329 = vadd.f32 %v1018, %v1328
          %1330 = vmatmul.bf16.gmra.mxu0 %v1118
          %v1331 = vpop.f32.mrf.mxu0
          %v1332 = vadd.f32 %v1018, %v1331
          %v1333 = vpop.f32.mrf.mxu0
          %v1334 = vadd.f32 %v1018, %v1333
          %1335 = vmatmul.bf16.gmra.mxu0 %v1121
          %v1336 = vpop.f32.mrf.mxu0
          %v1337 = vadd.f32 %v1018, %v1336
          %v1338 = vpop.f32.mrf.mxu0
          %v1339 = vadd.f32 %v1018, %v1338
          %1340 = vdwg.mxu0
          %1341 = vmatpush.bf16.msra.mxu0 %v1259
          %1342 = vmatpush.bf16.msra.mxu0 %v1258
          %1343 = vmatpush.bf16.msra.mxu0 %v1257
          %1344 = vmatpush.bf16.msra.mxu0 %v1256
          %1345 = vmatpush.bf16.msra.mxu0 %v1255
          %1346 = vmatpush.bf16.msra.mxu0 %v1254
          %1347 = vmatpush.bf16.msra.mxu0 %v1253
          %1348 = vmatpush.bf16.msra.mxu0 %v1252
          %1349 = vmatmul.bf16.gmra.mxu0 %v1101
          %v1350 = vpop.f32.mrf.mxu0
          %v1351 = vadd.f32 %v1302, %v1350
          %v1352 = vpop.f32.mrf.mxu0
          %v1353 = vadd.f32 %v1304, %v1352
          %1354 = vmatmul.bf16.gmra.mxu0 %v1104
          %v1355 = vpop.f32.mrf.mxu0
          %v1356 = vadd.f32 %v1307, %v1355
          %v1357 = vpop.f32.mrf.mxu0
          %v1358 = vadd.f32 %v1309, %v1357
          %1359 = vmatmul.bf16.gmra.mxu0 %v1107
          %v1360 = vpop.f32.mrf.mxu0
          %v1361 = vadd.f32 %v1312, %v1360
          %v1362 = vpop.f32.mrf.mxu0
          %v1363 = vadd.f32 %v1314, %v1362
          %1364 = vmatmul.bf16.gmra.mxu0 %v1110
          %v1365 = vpop.f32.mrf.mxu0
          %v1366 = vadd.f32 %v1317, %v1365
          %v1367 = vpop.f32.mrf.mxu0
          %v1368 = vadd.f32 %v1319, %v1367
          %1369 = vmatmul.bf16.gmra.mxu0 %v1113
          %v1370 = vpop.f32.mrf.mxu0
          %v1371 = vadd.f32 %v1322, %v1370
          %v1372 = vpop.f32.mrf.mxu0
          %v1373 = vadd.f32 %v1324, %v1372
          %1374 = vmatmul.bf16.gmra.mxu0 %v1116
          %v1375 = vpop.f32.mrf.mxu0
          %v1376 = vadd.f32 %v1327, %v1375
          %v1377 = vpop.f32.mrf.mxu0
          %v1378 = vadd.f32 %v1329, %v1377
          %1379 = vmatmul.bf16.gmra.mxu0 %v1119
          %v1380 = vpop.f32.mrf.mxu0
          %v1381 = vadd.f32 %v1332, %v1380
          %v1382 = vpop.f32.mrf.mxu0
          %v1383 = vadd.f32 %v1334, %v1382
          %1384 = vmatmul.bf16.gmra.mxu0 %v1122
          %v1385 = vpop.f32.mrf.mxu0
          %v1386 = vadd.f32 %v1337, %v1385
          %v1387 = vpop.f32.mrf.mxu0
          %v1388 = vadd.f32 %v1339, %v1387
          %1389 = vdwg.mxu0
          %1390 = vmatpush.bf16.msra.mxu0 %v1267
          %1391 = vmatpush.bf16.msra.mxu0 %v1266
          %1392 = vmatpush.bf16.msra.mxu0 %v1265
          %1393 = vmatpush.bf16.msra.mxu0 %v1264
          %1394 = vmatpush.bf16.msra.mxu0 %v1263
          %1395 = vmatpush.bf16.msra.mxu0 %v1262
          %1396 = vmatpush.bf16.msra.mxu0 %v1261
          %1397 = vmatpush.bf16.msra.mxu0 %v1260
          %1398 = vmatmul.bf16.gmra.mxu0 %v1102
          %v1399 = vpop.f32.mrf.mxu0
          %v1400 = vadd.f32 %v1351, %v1399
          %v1401 = vpop.f32.mrf.mxu0
          %v1402 = vadd.f32 %v1353, %v1401
          %1403 = vmatmul.bf16.gmra.mxu0 %v1105
          %v1404 = vpop.f32.mrf.mxu0
          %v1405 = vadd.f32 %v1356, %v1404
          %v1406 = vpop.f32.mrf.mxu0
          %v1407 = vadd.f32 %v1358, %v1406
          %1408 = vmatmul.bf16.gmra.mxu0 %v1108
          %v1409 = vpop.f32.mrf.mxu0
          %v1410 = vadd.f32 %v1361, %v1409
          %v1411 = vpop.f32.mrf.mxu0
          %v1412 = vadd.f32 %v1363, %v1411
          %1413 = vmatmul.bf16.gmra.mxu0 %v1111
          %v1414 = vpop.f32.mrf.mxu0
          %v1415 = vadd.f32 %v1366, %v1414
          %v1416 = vpop.f32.mrf.mxu0
          %v1417 = vadd.f32 %v1368, %v1416
          %1418 = vmatmul.bf16.gmra.mxu0 %v1114
          %v1419 = vpop.f32.mrf.mxu0
          %v1420 = vadd.f32 %v1371, %v1419
          %v1421 = vpop.f32.mrf.mxu0
          %v1422 = vadd.f32 %v1373, %v1421
          %1423 = vmatmul.bf16.gmra.mxu0 %v1117
          %v1424 = vpop.f32.mrf.mxu0
          %v1425 = vadd.f32 %v1376, %v1424
          %v1426 = vpop.f32.mrf.mxu0
          %v1427 = vadd.f32 %v1378, %v1426
          %1428 = vmatmul.bf16.gmra.mxu0 %v1120
          %v1429 = vpop.f32.mrf.mxu0
          %v1430 = vadd.f32 %v1381, %v1429
          %v1431 = vpop.f32.mrf.mxu0
          %v1432 = vadd.f32 %v1383, %v1431
          %1433 = vmatmul.bf16.gmra.mxu0 %v1123
          %v1434 = vpop.f32.mrf.mxu0
          %v1435 = vadd.f32 %v1386, %v1434
          %v1436 = vpop.f32.mrf.mxu0
          %v1437 = vadd.f32 %v1388, %v1436
          %1438 = vdwg.mxu0
          %1439 = vst [vmem:[%s278] sm:$0xff] %v1400
          %1440 = vst [vmem:[%s278 + $0x8] sm:$0xff] %v1402
          %1441 = vst [vmem:[%s278 + $0x10] sm:$0xff] %v1405
          %1442 = vst [vmem:[%s278 + $0x18] sm:$0xff] %v1407
          %1443 = vst [vmem:[%s278 + $0x20] sm:$0xff] %v1410
          %1444 = vst [vmem:[%s278 + $0x28] sm:$0xff] %v1412
          %1445 = vst [vmem:[%s278 + $0x30] sm:$0xff] %v1415
          %1446 = vst [vmem:[%s278 + $0x38] sm:$0xff] %v1417
          %1447 = vst [vmem:[%s278 + $0x40] sm:$0xff] %v1420
          %1448 = vst [vmem:[%s278 + $0x48] sm:$0xff] %v1422
          %1449 = vst [vmem:[%s278 + $0x50] sm:$0xff] %v1425
          %1450 = vst [vmem:[%s278 + $0x58] sm:$0xff] %v1427
          %1451 = vst [vmem:[%s278 + $0x60] sm:$0xff] %v1430
          %1452 = vst [vmem:[%s278 + $0x68] sm:$0xff] %v1432
          %1453 = vst [vmem:[%s278 + $0x70] sm:$0xff] %v1435
          %1454 = vst [vmem:[%s278 + $0x78] sm:$0xff] %v1437
        $region52: #{tpu_custom_call.1} parent=31 // pred_fallthru
          _
        %s1455 = sand.u32 %s123, 1
        %s1456 = scalar_lea.sflag [#allocation5], %s1455
        %s1457 = sand.u32 %s123, 1
        %s1458 = smul.addr %s1457, 128
        %s1459 = scalar_lea.vmem [#allocation9], %s1458
        // Predicated region
        $region53: #{tpu_custom_call.1} parent=31 // pred_check
          %p1460 = pneg %p133
        $region54: #{tpu_custom_call.1} parent=31 // pred_check_branch
          %1462 = sbr.rel (%p1460) target = $region56
        $region55: #{tpu_custom_call.1} parent=31 // pred_region
          %s1463 = smul.u32 16, %s27
          %1465 = vsyncadd %s1456, 0
          %s1466 = smul.addr %s1463, 2
          %s1467 = sadd.s32 %s28, %s1466
          %s1468 = smul.addr %s1467, 8
          %s1469 = scalar_lea.hbm %s3, %s1468
          %s1470 = sshll.u32 %s1459, 4
          %s1471 = int_to_ptr.vmem [resolvable:$true] %s1470
          %s1472 = sshll.u32 %s1469, 4
          %s1473 = int_to_ptr.hbm [resolvable:$true] %s1472
          %1478 = dma.vmem_to_hbm [thread:$0]  %s1471, 2048, %s1473, %s1456, 128, 256, 8
        $region56: #{tpu_custom_call.1} parent=31 // pred_fallthru
          _
      $region32: #{tpu_custom_call.1} parent=5 // pred_fallthru
        _
      %p1479 = scmp.le.s32.totalorder 2, %s18
      // Predicated region
      $region57: #{tpu_custom_call.1} parent=5 // pred_check
        %p1480 = pneg %p1479
      $region58: #{tpu_custom_call.1} parent=5 // pred_check_branch
        %1482 = sbr.rel (%p1480) target = $region60
      $region59: #{tpu_custom_call.1} parent=5 // pred_region
        %s1483 = ssub.s32 %s18, 2
        // Predicated region
        $region61: #{tpu_custom_call.1} parent=59 // pred_check
          %p1484 = pneg %p139
        $region62: #{tpu_custom_call.1} parent=59 // pred_check_branch
          %1486 = sbr.rel (%p1484) target = $region64
        $region63: #{tpu_custom_call.1} parent=59 // pred_region
          %s1487 = sand.u32 %s124, 1
          %s1488 = scalar_lea.sflag [#allocation5], %s1487
          %s1489 = sand.u32 %s124, 1
          %s1490 = smul.addr %s1489, 128
          %s1491 = scalar_lea.vmem [#allocation9], %s1490
          %1493 = dma.done %s1488, 2048
        $region64: #{tpu_custom_call.1} parent=59 // pred_fallthru
          _
      $region60: #{tpu_custom_call.1} parent=5 // pred_fallthru
        _
    $region6: #{tpu_custom_call.1} parent=1 // loop_footer
      %s22 = sadd.s32 1, %s18
    $region7: #{tpu_custom_call.1} parent=1 // loop_footer_branch
      %17 = sbr.rel target = $region3
    $region8: #{tpu_custom_call.1} parent=1 // loop_exit
      _
    %1494 = vsyncpa [#allocation4], 1
    %s1495 = scalar_lea.sflag [#allocation4], 1
    %1496 = vsyncpa %s1495, 1
    %1497 = vsyncpa [#allocation7], 1
    %s1498 = scalar_lea.sflag [#allocation7], 1
    %1499 = vsyncpa %s1498, 1
    %1500 = vsyncpa [#allocation5], 1
    %s1501 = scalar_lea.sflag [#allocation5], 1
    %1502 = vsyncpa %s1501, 1

</llo_original>
